<compile_context>
chip_gen: v7x
topology: tpu7x:2x2x1
jax: 0.10.0
libtpu: 0.0.40
codegen_flags: <defaults>
</compile_context>

<pallas_src>
import functools

import jax
import jax.numpy as jnp
from jax.experimental import pallas as pl
from jax.experimental.pallas import tpu as pltpu


def _round_up(x: int, m: int) -> int:
    return ((x + m - 1) // m) * m


def _pick_tile(dim: int, preferred: int, granule: int) -> int:
    """Largest aligned tile: `preferred` for big dims, else the dim rounded up to `granule`."""
    if dim >= preferred:
        return preferred
    return _round_up(dim, granule)


def _device_tile_config():
    """(tm_pref, tn_pref, tk_pref, vmem_limit_bytes) tuned per TPU generation."""
    try:
        kind = jax.devices()[0].device_kind.lower()
    except Exception:  # pragma: no cover - defensive, fall back to the safe config
        kind = ""
    if "v6" in kind:
        # 128 MiB physical VMEM, 32 MiB default scoped limit: go big (~16 MiB working set)
        # and raise the scoped limit explicitly.
        return 512, 1024, 1024, 64 << 20
    if "v7" in kind:
        # Only 64 MiB VMEM per TensorCore: keep ~10 MiB double-buffered working set so both
        # cores double-buffer comfortably under the default limit.
        return 512, 512, 1024, None
    # v5e / unknown: ~10 MiB double-buffered fits the 16 MiB default scoped limit.
    return 512, 512, 1024, None


def _linear_kernel(x_ref, w_ref, b_ref, o_ref):
    # x_ref: (tm, tk)   token rows x in_features slice
    # w_ref: (tk, tn)   pre-transposed weight slice in (in, out) layout
    # b_ref: (1, tn)    bias slice (epilogue only)
    # o_ref: (tm, tn)   f32 output tile, resident across the K grid axis -> the accumulator
    k = pl.program_id(2)
    part = jnp.dot(x_ref[...], w_ref[...], preferred_element_type=jnp.float32)

    @pl.when(k == 0)
    def _():
        o_ref[...] = part          # direct write: no zero-fill store + reload

    @pl.when(k > 0)
    def _():
        o_ref[...] += part

    @pl.when(k == pl.num_programs(2) - 1)
    def _():
        o_ref[...] += b_ref[...]   # broadcast bias add in the epilogue


@functools.partial(jax.jit, static_argnames=("n_out", "tm", "tn", "tk", "vmem_limit"))
def _linear_pallas(x2d, w_kn, b_row, *, n_out, tm, tn, tk, vmem_limit):
    """y = x2d @ W.T + b with W supplied pre-transposed/padded as w_kn (Kp, Np)."""
    T, K = x2d.shape
    Kp, Np = w_kn.shape
    Mp = _round_up(T, tm)

    # Pad x only when necessary (zero K-padding is accumulation-neutral).
    if Mp != T or Kp != K:
        x2d = jnp.pad(x2d, ((0, Mp - T), (0, Kp - K)))

    grid = (Mp // tm, Np // tn, Kp // tk)

    cost = pl.CostEstimate(
        flops=2 * Mp * Np * Kp,
        transcendentals=0,
        # Account for K-axis re-streaming of x and W across the output-tile grid.
        bytes_accessed=4 * (grid[1] * Mp * Kp + grid[0] * Kp * Np + Np + Mp * Np),
    )

    out_padded = pl.pallas_call(
        _linear_kernel,
        out_shape=jax.ShapeDtypeStruct((Mp, Np), jnp.float32),
        grid=grid,
        in_specs=[
            pl.BlockSpec((tm, tk), lambda i, j, k: (i, k)),   # x tile
            pl.BlockSpec((tk, tn), lambda i, j, k: (k, j)),   # weight tile, (in, out) layout
            pl.BlockSpec((1, tn), lambda i, j, k: (0, j)),    # bias tile
        ],
        out_specs=pl.BlockSpec((tm, tn), lambda i, j, k: (i, j)),
        compiler_params=pltpu.CompilerParams(
            dimension_semantics=("parallel", "parallel", "arbitrary"),
            vmem_limit_bytes=vmem_limit,
        ),
        cost_estimate=cost,
    )(x2d, w_kn, b_row)

    return out_padded[:T, :n_out]


class WithDevice:
    """JAX mirror of the PyTorch WithDevice wrapper: forward == wrapped module forward."""

    def __init__(self, module, device):
        self._module = module
        self._device = device

    def __call__(self, *args, **kwargs):
        return self._module(*args, **kwargs)

    @property
    def module(self):
        return self._module

    @property
    def device(self):
        return self._device


class PallasLinear:
    """Inner module: nn.Linear(in, out), deterministically initialized, Pallas forward."""

    def __init__(self, in_features, out_features, key):
        kw, kb = jax.random.split(key)
        bound = 1.0 / (in_features ** 0.5)
        # (out_features, in_features), exactly like torch.nn.Linear (kept for reference).
        self.weight = jax.random.uniform(
            kw, (out_features, in_features), jnp.float32, -bound, bound)
        self.bias = jax.random.uniform(kb, (out_features,), jnp.float32, -bound, bound)

        tm_pref, tn_pref, tk_pref, vmem_limit = _device_tile_config()
        self._tm_pref = tm_pref
        self._tn = _pick_tile(out_features, tn_pref, 128)
        self._tk = _pick_tile(in_features, tk_pref, 128)
        self._vmem_limit = vmem_limit
        self._n_out = out_features

        Kp = _round_up(in_features, self._tk)
        Np = _round_up(out_features, self._tn)

        # One-time transpose to (in, out) = (K, N) + zero-pad: no per-step MXU/XLU conflict,
        # lane-dense output along N, and no per-call H^2 pad/transpose traffic inside jit.
        w_kn = self.weight.T
        if w_kn.shape != (Kp, Np):
            w_kn = jnp.pad(w_kn, ((0, Kp - in_features), (0, Np - out_features)))
        self._w_kn = jax.block_until_ready(w_kn)

        b = self.bias if Np == out_features else jnp.pad(self.bias, (0, Np - out_features))
        self._b_row = jax.block_until_ready(b.reshape(1, Np))

    def __call__(self, x):
        # x: (B, S, H) -> flatten token dims, matmul in Pallas, restore shape.
        B, S, H = x.shape
        x2d = x.reshape(B * S, H)
        tm = _pick_tile(B * S, self._tm_pref, 8)
        y2d = _linear_pallas(
            x2d, self._w_kn, self._b_row,
            n_out=self._n_out, tm=tm, tn=self._tn, tk=self._tk,
            vmem_limit=self._vmem_limit)
        return y2d.reshape(B, S, self._n_out)


if __name__ == "__main__":
    key = jax.random.PRNGKey(0)
    k_in, k_mod = jax.random.split(key)

    B, S, H = 2, 8, 32
    x = jax.random.normal(k_in, (B, S, H), dtype=jnp.float32)

    inner = PallasLinear(H, H, k_mod)
    wrapped = WithDevice(inner, device=jax.devices()[0])

    out = wrapped(x)  # WithDevice.forward == inner module forward
    out = jax.block_until_ready(out)

    # Sanity check against plain-JAX reference of the inner module.
    ref = x.reshape(B * S, H) @ inner.weight.T + inner.bias
    assert out.shape == (B, S, H)
    assert jnp.allclose(out.reshape(B * S, H), ref, atol=1e-5, rtol=1e-5)

    print("KERNEL_OK")
</pallas_src>

<mosaic_0001>
module attributes {stable_mosaic.version = 11 : i64} {
  func.func @_linear_kernel(%arg0: i32, %arg1: i32, %arg2: i32, %arg3: memref<16x128xf32, #tpu.memory_space<vmem>>, %arg4: memref<128x128xf32, #tpu.memory_space<vmem>>, %arg5: memref<1x128xf32, #tpu.memory_space<vmem>>, %arg6: memref<16x128xf32, #tpu.memory_space<vmem>>) attributes {dimension_semantics = [#tpu.dimension_semantics<parallel>, #tpu.dimension_semantics<parallel>, #tpu.dimension_semantics<arbitrary>], iteration_bounds = array<i64: 1, 1, 1>, scalar_prefetch = 0 : i64, scratch_operands = 0 : i64, tpu.core_type = #tpu.core_type<tc>, window_params = [{transform_indices = @transform_0, window_bounds = array<i64: 16, 128>}, {transform_indices = @transform_1, window_bounds = array<i64: 128, 128>}, {transform_indices = @transform_2, window_bounds = array<i64: 1, 128>}, {transform_indices = @transform_3, window_bounds = array<i64: 16, 128>}]} {
    %c0 = arith.constant 0 : index
    %c0_0 = arith.constant 0 : index
    %0 = vector.load %arg3[%c0, %c0_0] : memref<16x128xf32, #tpu.memory_space<vmem>>, vector<16x128xf32>
    %c0_1 = arith.constant 0 : index
    %c0_2 = arith.constant 0 : index
    %1 = vector.load %arg4[%c0_1, %c0_2] : memref<128x128xf32, #tpu.memory_space<vmem>>, vector<128x128xf32>
    %cst = arith.constant dense<0.000000e+00> : vector<16x128xf32>
    %2 = tpu.matmul %0, %1, %cst {dimension_numbers = #tpu.dot_dimension_numbers<[1], [0], [0], [1], [0, 0, 1, 1], [], []>} : vector<16x128xf32>, vector<128x128xf32>, vector<16x128xf32> -> vector<16x128xf32>
    %c0_i32 = arith.constant 0 : i32
    %3 = arith.cmpi eq, %arg2, %c0_i32 : i32
    %4 = arith.extui %3 : i1 to i32
    %c0_i32_3 = arith.constant 0 : i32
    %5 = arith.cmpi ne, %4, %c0_i32_3 : i32
    scf.if %5 {
      %c0_8 = arith.constant 0 : index
      %c0_9 = arith.constant 0 : index
      %12 = vector.load %arg6[%c0_8, %c0_9] : memref<16x128xf32, #tpu.memory_space<vmem>>, vector<16x128xf32>
      tpu.vector_store %arg6[%c0_8, %c0_9], %2 {strides = array<i32>} : memref<16x128xf32, #tpu.memory_space<vmem>>, vector<16x128xf32>,
    } else {
    }
    %c0_i32_4 = arith.constant 0 : i32
    %6 = arith.cmpi sgt, %arg2, %c0_i32_4 : i32
    %7 = arith.extui %6 : i1 to i32
    %c0_i32_5 = arith.constant 0 : i32
    %8 = arith.cmpi ne, %7, %c0_i32_5 : i32
    scf.if %8 {
      %c0_8 = arith.constant 0 : index
      %c0_9 = arith.constant 0 : index
      %12 = vector.load %arg6[%c0_8, %c0_9] : memref<16x128xf32, #tpu.memory_space<vmem>>, vector<16x128xf32>
      %13 = arith.addf %12, %2 : vector<16x128xf32>
      %c0_10 = arith.constant 0 : index
      %c0_11 = arith.constant 0 : index
      %14 = vector.load %arg6[%c0_10, %c0_11] : memref<16x128xf32, #tpu.memory_space<vmem>>, vector<16x128xf32>
      tpu.vector_store %arg6[%c0_10, %c0_11], %13 {strides = array<i32>} : memref<16x128xf32, #tpu.memory_space<vmem>>, vector<16x128xf32>,
    } else {
    }
    %c0_i32_6 = arith.constant 0 : i32
    %9 = arith.cmpi eq, %arg2, %c0_i32_6 : i32
    %10 = arith.extui %9 : i1 to i32
    %c0_i32_7 = arith.constant 0 : i32
    %11 = arith.cmpi ne, %10, %c0_i32_7 : i32
    scf.if %11 {
      %c0_8 = arith.constant 0 : index
      %c0_9 = arith.constant 0 : index
      %12 = vector.load %arg6[%c0_8, %c0_9] : memref<16x128xf32, #tpu.memory_space<vmem>>, vector<16x128xf32>
      %c0_10 = arith.constant 0 : index
      %c0_11 = arith.constant 0 : index
      %13 = vector.load %arg5[%c0_10, %c0_11] : memref<1x128xf32, #tpu.memory_space<vmem>>, vector<1x128xf32>
      %14 = vector.broadcast %13 : vector<1x128xf32> to vector<16x128xf32>
      %15 = arith.addf %12, %14 : vector<16x128xf32>
      %c0_12 = arith.constant 0 : index
      %c0_13 = arith.constant 0 : index
      %16 = vector.load %arg6[%c0_12, %c0_13] : memref<16x128xf32, #tpu.memory_space<vmem>>, vector<16x128xf32>
      tpu.vector_store %arg6[%c0_12, %c0_13], %15 {strides = array<i32>} : memref<16x128xf32, #tpu.memory_space<vmem>>, vector<16x128xf32>,
    } else {
    }
    return
  }
  func.func @transform_0(%arg0: i32, %arg1: i32, %arg2: i32) -> (i32, i32) {
    %c0_i32 = arith.constant 0 : i32
    return %arg0, %arg2 : i32, i32
  }
  func.func @transform_1(%arg0: i32, %arg1: i32, %arg2: i32) -> (i32, i32) {
    %c0_i32 = arith.constant 0 : i32
    return %arg2, %arg1 : i32, i32
  }
  func.func @transform_2(%arg0: i32, %arg1: i32, %arg2: i32) -> (i32, i32) {
    %c0_i32 = arith.constant 0 : i32
    %c0_i32_0 = arith.constant 0 : i32
    return %c0_i32, %arg1 : i32, i32
  }
  func.func @transform_3(%arg0: i32, %arg1: i32, %arg2: i32) -> (i32, i32) {
    %c0_i32 = arith.constant 0 : i32
    return %arg0, %arg1 : i32, i32
  }
}

</mosaic_0001>

<llo_original>
// kernel: _linear_pallas.1
$region0: #{_linear_pallas.1}
  #allocation0 [shape = 'u32[]', space=smem, size = 0x4, offset = 0x4, fixed_abs, tag = 'smem constant byte address 0x4 - core index']
  #allocation1 [shape = 'u32[144,128]{1,0:T(1,128)}', space=vmem, size = 0x12000, scoped, tag = 'internal scratch']
  %s0 = inlined_call_operand.vmem [shape: f32[16,128], index: 0, kind: input, shape index: {}]
  %s1 = inlined_call_operand.hbm [shape: f32[128,128], index: 1, kind: input, shape index: {}]
  %s2 = inlined_call_operand.vmem [shape: f32[1,128], index: 2, kind: input, shape index: {}]
  %s3 = inlined_call_operand.hbm [shape: f32[16,128], index: 3, kind: output, shape index: {}]
  %s4 = sld [smem:[#allocation0]]
  $region38: #{_linear_pallas.1} parent=0
    _
  %s6 = ssub.s32 1, %s4
  %s7 = scalar_select 0, %s6, %s4
  $region1: #{_linear_pallas.1} parent=0
    #allocation2 [shape = 'u8[65536]{0}', space=vmem, size = 0x10000, scoped, tag = 'input window, operand 1, single buffered']
    #allocation3 [shape = 's32[1]{0}', space=sflag, size = 0x4, scoped, tag = 'scoped memory for _linear_pallas.1']
    #allocation4 [shape = 's32[1]{0}', space=sflag, size = 0x4, scoped, tag = 'scoped memory for _linear_pallas.1']
    #allocation5 [shape = 'u8[8192]{0}', space=vmem, size = 0x2000, scoped, tag = 'output window, operand 0, single buffered']
    %8 = vsyncpa [#allocation3], 0
    %9 = vsyncpa [#allocation4], 0
    // Predicated region
    $region2: #{_linear_pallas.1} parent=1 // pred_check
      _
    $region3: #{_linear_pallas.1} parent=1 // pred_check_branch
      %11 = sbr.rel (0) target = $region5
    $region4: #{_linear_pallas.1} parent=1 // pred_region
      _
    $region5: #{_linear_pallas.1} parent=1 // pred_fallthru
      _
    // Predicated region
    $region6: #{_linear_pallas.1} parent=1 // pred_check
      _
    $region7: #{_linear_pallas.1} parent=1 // pred_check_branch
      %13 = sbr.rel (0) target = $region9
    $region8: #{_linear_pallas.1} parent=1 // pred_region
      %s15 = ssub.s32 2048, 2048
      %16 = vsyncadd [#allocation3], %s15
      %s17 = sshll.u32 [#allocation2], 4
      %s18 = int_to_ptr.vmem [resolvable:$true] %s17
      %23 = dma.hbm_to_vmem [thread:$0]  %s1, 2048, %s18, [#allocation3], 128, 128, 8
    $region9: #{_linear_pallas.1} parent=1 // pred_fallthru
      _
    // Predicated region
    $region10: #{_linear_pallas.1} parent=1 // pred_check
      _
    $region11: #{_linear_pallas.1} parent=1 // pred_check_branch
      %25 = sbr.rel (0) target = $region13
    $region12: #{_linear_pallas.1} parent=1 // pred_region
      _
    $region13: #{_linear_pallas.1} parent=1 // pred_fallthru
      _
    // Predicated region
    $region14: #{_linear_pallas.1} parent=1 // pred_check
      _
    $region15: #{_linear_pallas.1} parent=1 // pred_check_branch
      %27 = sbr.rel (0) target = $region17
    $region16: #{_linear_pallas.1} parent=1 // pred_region
      %28 = dma.done [#allocation3], 2048
    $region17: #{_linear_pallas.1} parent=1 // pred_fallthru
      _
    %v29 = vld [vmem:[%s0] sm:$0xff]
    %v30 = vld [vmem:[%s0 + $0x8] sm:$0xff]
    %v31 = vld [vmem:[#allocation2] sm:$0xff]
    %v32 = vld [vmem:[#allocation2 + $0x8] sm:$0xff]
    %v33 = vld [vmem:[#allocation2 + $0x10] sm:$0xff]
    %v34 = vld [vmem:[#allocation2 + $0x18] sm:$0xff]
    %v35 = vld [vmem:[#allocation2 + $0x20] sm:$0xff]
    %v36 = vld [vmem:[#allocation2 + $0x28] sm:$0xff]
    %v37 = vld [vmem:[#allocation2 + $0x30] sm:$0xff]
    %v38 = vld [vmem:[#allocation2 + $0x38] sm:$0xff]
    %v39 = vld [vmem:[#allocation2 + $0x40] sm:$0xff]
    %v40 = vld [vmem:[#allocation2 + $0x48] sm:$0xff]
    %v41 = vld [vmem:[#allocation2 + $0x50] sm:$0xff]
    %v42 = vld [vmem:[#allocation2 + $0x58] sm:$0xff]
    %v43 = vld [vmem:[#allocation2 + $0x60] sm:$0xff]
    %v44 = vld [vmem:[#allocation2 + $0x68] sm:$0xff]
    %v45 = vld [vmem:[#allocation2 + $0x70] sm:$0xff]
    %v46 = vld [vmem:[#allocation2 + $0x78] sm:$0xff]
    %47 = vmatprep.subr.mxu0 0.0
    %48 = vmatpush1.msra.mxu0 %v31
    %49 = vmatprep.subr.mxu0 0.0
    %50 = vmatpush1.msra.mxu0 %v32
    %51 = vmatprep.subr.mxu0 0.0
    %52 = vmatpush1.msra.mxu0 %v33
    %53 = vmatprep.subr.mxu0 0.0
    %54 = vmatpush1.msra.mxu0 %v34
    %55 = vmatprep.subr.mxu0 0.0
    %56 = vmatpush1.msra.mxu0 %v35
    %57 = vmatprep.subr.mxu0 0.0
    %58 = vmatpush1.msra.mxu0 %v36
    %59 = vmatprep.subr.mxu0 0.0
    %60 = vmatpush1.msra.mxu0 %v37
    %61 = vmatprep.subr.mxu0 0.0
    %62 = vmatpush1.msra.mxu0 %v38
    %63 = vmatprep.subr.mxu0 0.0
    %64 = vmatpush1.msra.mxu0 %v39
    %65 = vmatprep.subr.mxu0 0.0
    %66 = vmatpush1.msra.mxu0 %v40
    %67 = vmatprep.subr.mxu0 0.0
    %68 = vmatpush1.msra.mxu0 %v41
    %69 = vmatprep.subr.mxu0 0.0
    %70 = vmatpush1.msra.mxu0 %v42
    %71 = vmatprep.subr.mxu0 0.0
    %72 = vmatpush1.msra.mxu0 %v43
    %73 = vmatprep.subr.mxu0 0.0
    %74 = vmatpush1.msra.mxu0 %v44
    %75 = vmatprep.subr.mxu0 0.0
    %76 = vmatpush1.msra.mxu0 %v45
    %77 = vmatprep.subr.mxu0 0.0
    %78 = vmatpush1.msra.mxu0 %v46
    %79 = vmatprep.subr.mxu0 0.0
    %80 = vmatpush1.msra.mxu0 0.0
    %81 = vmatprep.subr.mxu0 0.0
    %82 = vmatpush1.msra.mxu0 0.0
    %83 = vmatprep.subr.mxu0 0.0
    %84 = vmatpush1.msra.mxu0 0.0
    %85 = vmatprep.subr.mxu0 0.0
    %86 = vmatpush1.msra.mxu0 0.0
    %87 = vmatprep.subr.mxu0 0.0
    %88 = vmatpush1.msra.mxu0 0.0
    %89 = vmatprep.subr.mxu0 0.0
    %90 = vmatpush1.msra.mxu0 0.0
    %91 = vmatprep.subr.mxu0 0.0
    %92 = vmatpush1.msra.mxu0 0.0
    %93 = vmatprep.subr.mxu0 0.0
    %94 = vmatpush1.msra.mxu0 0.0
    %95 = vmatprep.subr.mxu0 0.0
    %96 = vmatpush1.msra.mxu0 0.0
    %97 = vmatprep.subr.mxu0 0.0
    %98 = vmatpush1.msra.mxu0 0.0
    %99 = vmatprep.subr.mxu0 0.0
    %100 = vmatpush1.msra.mxu0 0.0
    %101 = vmatprep.subr.mxu0 0.0
    %102 = vmatpush1.msra.mxu0 0.0
    %103 = vmatprep.subr.mxu0 0.0
    %104 = vmatpush1.msra.mxu0 0.0
    %105 = vmatprep.subr.mxu0 0.0
    %106 = vmatpush1.msra.mxu0 0.0
    %107 = vmatprep.subr.mxu0 0.0
    %108 = vmatpush1.msra.mxu0 0.0
    %109 = vmatprep.subr.mxu0 0.0
    %110 = vmatpush1.msra.mxu0 0.0
    %111 = vmatprep.mubr.f32.mxu0 0.0
    %112 = vmatmul.mubr.f32.gmra.mrb[0].mxu0 %v29
    %v113 = vpop.f32.mrb[0].mxu0
    %v114 = vadd.f32 0.0, %v113
    %v115 = vpop.f32.mrb[0].mxu0
    %116 = vmatprep.mubr.f32.mxu0 0.0
    %117 = vmatmul.mubr.f32.gmra.mrb[0].mxu0 %v30
    %v118 = vpop.f32.mrb[0].mxu0
    %v119 = vadd.f32 0.0, %v118
    %v120 = vpop.f32.mrb[0].mxu0
    %121 = vdwg.mxu0
    %p122 = scmp.eq.s32.totalorder 0, 0
    // Predicated region
    $region18: #{_linear_pallas.1} parent=1 // pred_check
      %p123 = pneg %p122
    $region19: #{_linear_pallas.1} parent=1 // pred_check_branch
      %125 = sbr.rel (%p123) target = $region21
    $region20: #{_linear_pallas.1} parent=1 // pred_region
      %126 = vst [vmem:[#allocation5] sm:$0xff] %v114
      %127 = vst [vmem:[#allocation5 + $0x8] sm:$0xff] %v119
    $region21: #{_linear_pallas.1} parent=1 // pred_fallthru
      _
    %p128 = scmp.gt.s32.totalorder 0, 0
    // Predicated region
    $region22: #{_linear_pallas.1} parent=1 // pred_check
      %p129 = pneg %p128
    $region23: #{_linear_pallas.1} parent=1 // pred_check_branch
      %131 = sbr.rel (%p129) target = $region25
    $region24: #{_linear_pallas.1} parent=1 // pred_region
      %v132 = vld [vmem:[#allocation5] sm:$0xff]
      %v133 = vld [vmem:[#allocation5 + $0x8] sm:$0xff]
      %v134 = vadd.f32 %v132, %v114
      %v135 = vadd.f32 %v133, %v119
      %136 = vst [vmem:[#allocation5] sm:$0xff] %v134
      %137 = vst [vmem:[#allocation5 + $0x8] sm:$0xff] %v135
    $region25: #{_linear_pallas.1} parent=1 // pred_fallthru
      _
    // Predicated region
    $region26: #{_linear_pallas.1} parent=1 // pred_check
      %p138 = pneg %p122
    $region27: #{_linear_pallas.1} parent=1 // pred_check_branch
      %140 = sbr.rel (%p138) target = $region29
    $region28: #{_linear_pallas.1} parent=1 // pred_region
      %v141 = vld [vmem:[#allocation5] sm:$0xff]
      %v142 = vld [vmem:[#allocation5 + $0x8] sm:$0xff]
      %v143 = vld [vmem:[%s2] sm:$0x1]
      %v145 = vlaneseq
      %v146 = vshrl.u32 %v145, 7
      %v147 = vsub.s32 0, %v146
      %v148 = vrot.slane %v143, %v147
      %v150 = vadd.f32 %v141, %v148
      %v151 = vadd.f32 %v142, %v148
      %152 = vst [vmem:[#allocation5] sm:$0xff] %v150
      %153 = vst [vmem:[#allocation5 + $0x8] sm:$0xff] %v151
    $region29: #{_linear_pallas.1} parent=1 // pred_fallthru
      _
    // Predicated region
    $region30: #{_linear_pallas.1} parent=1 // pred_check
      _
    $region31: #{_linear_pallas.1} parent=1 // pred_check_branch
      %155 = sbr.rel (0) target = $region33
    $region32: #{_linear_pallas.1} parent=1 // pred_region
      %s157 = ssub.s32 256, 256
      %158 = vsyncadd [#allocation4], %s157
      %s159 = sshll.u32 [#allocation5], 4
      %s160 = int_to_ptr.vmem [resolvable:$true] %s159
      %165 = dma.vmem_to_hbm [thread:$0]  %s160, 256, %s3, [#allocation4], 128, 128, 8
    $region33: #{_linear_pallas.1} parent=1 // pred_fallthru
      _
    // Predicated region
    $region34: #{_linear_pallas.1} parent=1 // pred_check
      _
    $region35: #{_linear_pallas.1} parent=1 // pred_check_branch
      %167 = sbr.rel (0) target = $region37
    $region36: #{_linear_pallas.1} parent=1 // pred_region
      %168 = dma.done [#allocation4], 256
    $region37: #{_linear_pallas.1} parent=1 // pred_fallthru
      _
    %169 = vsyncpa [#allocation3], 1
    %170 = vsyncpa [#allocation4], 1

</llo_original>
